<compile_context>
chip_gen: v7x
topology: tpu7x:2x2x1
jax: 0.10.0
libtpu: 0.0.40
codegen_flags: <defaults>
</compile_context>

<pallas_src>
import jax
import jax.numpy as jnp
from jax import lax
from jax.experimental import pallas as pl
from jax.experimental.pallas import tpu as pltpu

OTHER = 1.0                    # stand-in for the undefined `other`
IN_FEATURES = 8
OUT_FEATURES = 16
PACK = 8                       # batch rows packed into one 128-lane output row
PACKED_K = PACK * IN_FEATURES  # 64
PACKED_N = PACK * OUT_FEATURES # 128
SMALL_BATCH_JNP_PATH = 1024    # below this, skip pallas_call entirely


def _round_up(n, m):
    return (n + m - 1) // m * m


def packed_linear_relu_kernel(x_ref, w_ref, b_ref, o_ref):
    """x_ref: (TM, 64) f32 -- 8 batch rows packed per row.
    w_ref:  (64, 128) f32 block-diagonal packed weight (VMEM-resident).
    b_ref:  (1, 128) f32, (bias - OTHER) tiled over the 8 packed groups.
    o_ref:  (TM, 128) f32 -- 8 x 16 outputs per row, fully lane-dense stores.
    """
    y = jnp.dot(
        x_ref[...],
        w_ref[...],
        preferred_element_type=jnp.float32,
        precision=lax.Precision.HIGHEST,
    )
    o_ref[...] = jnp.maximum(y + b_ref[...], 0.0).astype(o_ref.dtype)


def prepare_params(w_torch_layout, b):
    """One-time parameter prep (not per call).

    w_torch_layout: (out=16, in=8) torch layout; b: (16,).
    Returns plain (fast-path) and packed (Pallas) parameters with the
    `- OTHER` constant folded into the bias.
    """
    w = w_torch_layout.T.astype(jnp.float32)            # (8, 16)
    b_eff = (b - OTHER).astype(jnp.float32)             # (16,)

    # Block-diagonal packed weight: group g maps input lanes [8g, 8g+8) to
    # output lanes [16g, 16g+16).
    w_packed = jnp.zeros((PACKED_K, PACKED_N), jnp.float32)
    for g in range(PACK):
        w_packed = w_packed.at[
            g * IN_FEATURES:(g + 1) * IN_FEATURES,
            g * OUT_FEATURES:(g + 1) * OUT_FEATURES,
        ].set(w)
    b_packed = jnp.tile(b_eff, PACK)[None, :]            # (1, 128)
    return dict(w=w, b_eff=b_eff, w_packed=w_packed, b_packed=b_packed)


def _choose_tile(num_packed_rows, tm_max=4096):
    """Packed-row tile: multiple of 8, and >= 2 grid steps when there is
    enough work so the parallel batch axis shards across both v7x cores."""
    g = max(num_packed_rows, 1)
    if g <= 2 * PACK:
        return _round_up(g, PACK)
    return max(PACK, min(tm_max, _round_up(pl.cdiv(g, 2), PACK)))


def model_forward(x, params, *, tm_max=4096, force_pallas=False):
    """x: (B, 8) f32 -> relu(x @ W.T + b - OTHER): (B, 16) f32."""
    B = x.shape[0]

    if B <= SMALL_BATCH_JNP_PATH and not force_pallas:
        # Tiny batches (incl. the spec's B=1): launch overhead >> work.
        y = jnp.matmul(x, params["w"], precision=lax.Precision.HIGHEST)
        return jnp.maximum(y + params["b_eff"], 0.0)

    # Pack 8 rows per 128-lane output row.  Pad only to a multiple of 8
    # (<= 7 rows), never to the tile boundary.
    b8 = _round_up(B, PACK)
    if b8 != B:
        x = jnp.pad(x, ((0, b8 - B), (0, 0)))
    g = b8 // PACK
    x_packed = x.reshape(g, PACKED_K)        # free: contiguous row-major reshape

    tm = _choose_tile(g, tm_max)
    grid = (pl.cdiv(g, tm),)                 # partial last block handled by Pallas

    out_packed = pl.pallas_call(
        packed_linear_relu_kernel,
        out_shape=jax.ShapeDtypeStruct((g, PACKED_N), jnp.float32),
        grid=grid,
        in_specs=[
            pl.BlockSpec((tm, PACKED_K), lambda i: (i, 0)),       # stream batch tiles
            pl.BlockSpec((PACKED_K, PACKED_N), lambda i: (0, 0)), # weights VMEM-resident
            pl.BlockSpec((1, PACKED_N), lambda i: (0, 0)),        # folded bias resident
        ],
        out_specs=pl.BlockSpec((tm, PACKED_N), lambda i: (i, 0)), # lane-dense stores
        compiler_params=pltpu.CompilerParams(
            dimension_semantics=("parallel",),                    # both TCs on v7x
        ),
    )(x_packed, params["w_packed"], params["b_packed"])

    out = out_packed.reshape(b8, OUT_FEATURES)                    # free reshape
    return out if b8 == B else out[:B]


if __name__ == "__main__":
    key = jax.random.PRNGKey(0)
    kx, kw, kb, kx2, kx3 = jax.random.split(key, 5)

    # Deterministic synthetic parameters (shapes from nn.Linear(8, 16)).
    bound = 1.0 / jnp.sqrt(float(IN_FEATURES))
    w_t = jax.random.uniform(kw, (OUT_FEATURES, IN_FEATURES), jnp.float32, -bound, bound)
    b = jax.random.uniform(kb, (OUT_FEATURES,), jnp.float32, -bound, bound)
    params = prepare_params(w_t, b)

    def ref_fn(x):
        y = jnp.matmul(x, w_t.T, precision=lax.Precision.HIGHEST)
        return jnp.maximum(y + b - OTHER, 0.0)

    # Spec shape from the module: x1 = torch.randn(1, 8).
    # Exercise both the jnp fast path and the Pallas kernel on the same input.
    x1 = jax.random.normal(kx, (1, IN_FEATURES), jnp.float32)
    out_fast = jax.block_until_ready(model_forward(x1, params))
    out_pallas = jax.block_until_ready(model_forward(x1, params, force_pallas=True))
    assert out_fast.shape == (1, OUT_FEATURES)
    assert out_pallas.shape == (1, OUT_FEATURES)
    assert jnp.allclose(out_fast, ref_fn(x1), atol=1e-5), "fast-path mismatch (B=1)"
    assert jnp.allclose(out_pallas, ref_fn(x1), atol=1e-5), "pallas mismatch (B=1)"

    # Batched call exercising the packed / gridded Pallas path (multiple of 8).
    xb = jax.random.normal(kx2, (4096, IN_FEATURES), jnp.float32)
    outb = jax.block_until_ready(model_forward(xb, params))
    assert outb.shape == (4096, OUT_FEATURES)
    assert jnp.allclose(outb, ref_fn(xb), atol=1e-5), "pallas mismatch (B=4096)"

    # Ragged batch (not a multiple of 8) exercising the <=7-row pad and
    # partial-last-block masking.
    xr = jax.random.normal(kx3, (2053, IN_FEATURES), jnp.float32)
    outr = jax.block_until_ready(model_forward(xr, params))
    assert outr.shape == (2053, OUT_FEATURES)
    assert jnp.allclose(outr, ref_fn(xr), atol=1e-5), "pallas mismatch (B=2053)"

    print("KERNEL_OK")
</pallas_src>

<mosaic_0001>
module attributes {stable_mosaic.version = 11 : i64} {
  func.func @packed_linear_relu_kernel(%arg0: i32, %arg1: memref<8x64xf32, #tpu.memory_space<vmem>>, %arg2: memref<64x128xf32, #tpu.memory_space<vmem>>, %arg3: memref<1x128xf32, #tpu.memory_space<vmem>>, %arg4: memref<8x128xf32, #tpu.memory_space<vmem>>) attributes {dimension_semantics = [#tpu.dimension_semantics<parallel>], iteration_bounds = array<i64: 1>, scalar_prefetch = 0 : i64, scratch_operands = 0 : i64, tpu.core_type = #tpu.core_type<tc>, window_params = [{transform_indices = @transform_0, window_bounds = array<i64: 8, 64>}, {pipeline_mode = #tpu.pipeline_mode<synchronous>, transform_indices = @transform_1, window_bounds = array<i64: 64, 128>}, {pipeline_mode = #tpu.pipeline_mode<synchronous>, transform_indices = @transform_2, window_bounds = array<i64: 1, 128>}, {transform_indices = @transform_3, window_bounds = array<i64: 8, 128>}]} {
    %c0 = arith.constant 0 : index
    %c0_0 = arith.constant 0 : index
    %0 = vector.load %arg1[%c0, %c0_0] : memref<8x64xf32, #tpu.memory_space<vmem>>, vector<8x64xf32>
    %c0_1 = arith.constant 0 : index
    %c0_2 = arith.constant 0 : index
    %1 = vector.load %arg2[%c0_1, %c0_2] : memref<64x128xf32, #tpu.memory_space<vmem>>, vector<64x128xf32>
    %cst = arith.constant dense<0.000000e+00> : vector<8x128xf32>
    %2 = tpu.matmul %0, %1, %cst {dimension_numbers = #tpu.dot_dimension_numbers<[1], [0], [0], [1], [0, 0, 1, 1], [], []>, precision = #tpu.contract_precision<fp32>} : vector<8x64xf32>, vector<64x128xf32>, vector<8x128xf32> -> vector<8x128xf32>
    %c0_3 = arith.constant 0 : index
    %c0_4 = arith.constant 0 : index
    %3 = vector.load %arg3[%c0_3, %c0_4] : memref<1x128xf32, #tpu.memory_space<vmem>>, vector<1x128xf32>
    %4 = vector.broadcast %3 : vector<1x128xf32> to vector<8x128xf32>
    %5 = arith.addf %2, %4 : vector<8x128xf32>
    %cst_5 = arith.constant 0.000000e+00 : f32
    %6 = vector.broadcast %cst_5 : f32 to vector<8x128xf32>
    %7 = arith.maximumf %5, %6 : vector<8x128xf32>
    %c0_6 = arith.constant 0 : index
    %c0_7 = arith.constant 0 : index
    %8 = vector.load %arg4[%c0_6, %c0_7] : memref<8x128xf32, #tpu.memory_space<vmem>>, vector<8x128xf32>
    tpu.vector_store %arg4[%c0_6, %c0_7], %7 {strides = array<i32>} : memref<8x128xf32, #tpu.memory_space<vmem>>, vector<8x128xf32>,
    return
  }
  func.func @transform_0(%arg0: i32) -> (i32, i32) {
    %c0_i32 = arith.constant 0 : i32
    %c0_i32_0 = arith.constant 0 : i32
    return %arg0, %c0_i32 : i32, i32
  }
  func.func @transform_1(%arg0: i32) -> (i32, i32) {
    %c0_i32 = arith.constant 0 : i32
    %c0_i32_0 = arith.constant 0 : i32
    %c0_i32_1 = arith.constant 0 : i32
    return %c0_i32, %c0_i32_0 : i32, i32
  }
  func.func @transform_2(%arg0: i32) -> (i32, i32) {
    %c0_i32 = arith.constant 0 : i32
    %c0_i32_0 = arith.constant 0 : i32
    %c0_i32_1 = arith.constant 0 : i32
    return %c0_i32, %c0_i32_0 : i32, i32
  }
  func.func @transform_3(%arg0: i32) -> (i32, i32) {
    %c0_i32 = arith.constant 0 : i32
    %c0_i32_0 = arith.constant 0 : i32
    return %arg0, %c0_i32 : i32, i32
  }
}

</mosaic_0001>

<llo_original>
// kernel: tpu_custom_call.1
$region0: #{tpu_custom_call.1}
  #allocation0 [shape = 'u32[]', space=smem, size = 0x4, offset = 0x4, fixed_abs, tag = 'smem constant byte address 0x4 - core index']
  #allocation1 [shape = 'u32[144,128]{1,0:T(1,128)}', space=vmem, size = 0x12000, scoped, tag = 'internal scratch']
  %s0 = inlined_call_operand.hbm [shape: f32[1,64], index: 0, kind: input, shape index: {}]
  %s1 = inlined_call_operand.hbm [shape: f32[64,128], index: 1, kind: input, shape index: {}]
  %s2 = inlined_call_operand.vmem [shape: f32[1,128], index: 2, kind: input, shape index: {}]
  %s3 = inlined_call_operand.hbm [shape: f32[1,128], index: 3, kind: output, shape index: {}]
  %s4 = sld [smem:[#allocation0]]
  $region30: #{tpu_custom_call.1} parent=0
    _
  %s6 = ssub.s32 1, %s4
  %s7 = scalar_select 0, %s6, %s4
  $region1: #{tpu_custom_call.1} parent=0
    #allocation2 [shape = 'u8[4096]{0}', space=vmem, size = 0x1000, scoped, tag = 'input window, operand 0, single buffered']
    #allocation3 [shape = 's32[1]{0}', space=sflag, size = 0x4, scoped, tag = 'scoped memory for tpu_custom_call.1']
    #allocation4 [shape = 's32[1]{0}', space=sflag, size = 0x4, scoped, tag = 'scoped memory for tpu_custom_call.1']
    #allocation5 [shape = 'u8[32768]{0}', space=vmem, size = 0x8000, scoped, tag = 'input window, operand 1, single buffered']
    #allocation6 [shape = 's32[1]{0}', space=sflag, size = 0x4, scoped, tag = 'scoped memory for tpu_custom_call.1']
    #allocation7 [shape = 'u8[4096]{0}', space=vmem, size = 0x1000, scoped, tag = 'output window, operand 0, single buffered']
    %8 = vsyncpa [#allocation3], 0
    %9 = vsyncpa [#allocation6], 0
    %10 = vsyncpa [#allocation4], 0
    // Predicated region
    $region2: #{tpu_custom_call.1} parent=1 // pred_check
      _
    $region3: #{tpu_custom_call.1} parent=1 // pred_check_branch
      %12 = sbr.rel (0) target = $region5
    $region4: #{tpu_custom_call.1} parent=1 // pred_region
      %s14 = ssub.s32 128, 16
      %15 = vsyncadd [#allocation3], %s14
      %s16 = sshll.u32 [#allocation2], 4
      %s17 = int_to_ptr.vmem [resolvable:$true] %s16
      %22 = dma.hbm_to_vmem [thread:$0]  %s0, 16, %s17, [#allocation3], 16, 16, 1
    $region5: #{tpu_custom_call.1} parent=1 // pred_fallthru
      _
    // Predicated region
    $region6: #{tpu_custom_call.1} parent=1 // pred_check
      _
    $region7: #{tpu_custom_call.1} parent=1 // pred_check_branch
      %24 = sbr.rel (0) target = $region9
    $region8: #{tpu_custom_call.1} parent=1 // pred_region
      %s26 = ssub.s32 1024, 1024
      %27 = vsyncadd [#allocation6], %s26
      %s28 = sshll.u32 [#allocation5], 4
      %s29 = int_to_ptr.vmem [resolvable:$true] %s28
      %34 = dma.hbm_to_vmem [thread:$0]  %s1, 1024, %s29, [#allocation6], 128, 128, 8
    $region9: #{tpu_custom_call.1} parent=1 // pred_fallthru
      _
    // Predicated region
    $region10: #{tpu_custom_call.1} parent=1 // pred_check
      _
    $region11: #{tpu_custom_call.1} parent=1 // pred_check_branch
      %36 = sbr.rel (0) target = $region13
    $region12: #{tpu_custom_call.1} parent=1 // pred_region
      _
    $region13: #{tpu_custom_call.1} parent=1 // pred_fallthru
      _
    // Predicated region
    $region14: #{tpu_custom_call.1} parent=1 // pred_check
      _
    $region15: #{tpu_custom_call.1} parent=1 // pred_check_branch
      %38 = sbr.rel (0) target = $region17
    $region16: #{tpu_custom_call.1} parent=1 // pred_region
      %39 = dma.done [#allocation3], 128
    $region17: #{tpu_custom_call.1} parent=1 // pred_fallthru
      _
    // Predicated region
    $region18: #{tpu_custom_call.1} parent=1 // pred_check
      _
    $region19: #{tpu_custom_call.1} parent=1 // pred_check_branch
      %41 = sbr.rel (0) target = $region21
    $region20: #{tpu_custom_call.1} parent=1 // pred_region
      %42 = dma.done [#allocation6], 1024
    $region21: #{tpu_custom_call.1} parent=1 // pred_fallthru
      _
    %v43 = vld [vmem:[#allocation2] sm:$0xff]
    %v44 = vld [vmem:[#allocation5] sm:$0xff]
    %v45 = vld [vmem:[#allocation5 + $0x8] sm:$0xff]
    %v46 = vld [vmem:[#allocation5 + $0x10] sm:$0xff]
    %v47 = vld [vmem:[#allocation5 + $0x18] sm:$0xff]
    %v48 = vld [vmem:[#allocation5 + $0x20] sm:$0xff]
    %v49 = vld [vmem:[#allocation5 + $0x28] sm:$0xff]
    %v50 = vld [vmem:[#allocation5 + $0x30] sm:$0xff]
    %v51 = vld [vmem:[#allocation5 + $0x38] sm:$0xff]
    %v52 = vld [vmem:[%s2] sm:$0x1]
    %v54 = vlaneseq
    %v55 = vshrl.u32 %v54, 7
    %v56 = vsub.s32 0, %v55
    %v57 = vrot.slane %v52, %v56
    %vm59 = vcmask 523264
    %v61 = vsel %vm59, %v43, 0
    %63 = vmatprep.subr.mxu0 0.0
    %v64 = vand.u32 %v44, 4294901760
    %65 = vmatpush1.msra.mxu0 %v64
    %66 = vmatprep.subr.mxu0 0.0
    %v67 = vand.u32 %v45, 4294901760
    %68 = vmatpush1.msra.mxu0 %v67
    %69 = vmatprep.subr.mxu0 0.0
    %v70 = vand.u32 %v46, 4294901760
    %71 = vmatpush1.msra.mxu0 %v70
    %72 = vmatprep.subr.mxu0 0.0
    %v73 = vand.u32 %v47, 4294901760
    %74 = vmatpush1.msra.mxu0 %v73
    %75 = vmatprep.subr.mxu0 0.0
    %v76 = vand.u32 %v48, 4294901760
    %77 = vmatpush1.msra.mxu0 %v76
    %78 = vmatprep.subr.mxu0 0.0
    %v79 = vand.u32 %v49, 4294901760
    %80 = vmatpush1.msra.mxu0 %v79
    %81 = vmatprep.subr.mxu0 0.0
    %v82 = vand.u32 %v50, 4294901760
    %83 = vmatpush1.msra.mxu0 %v82
    %84 = vmatprep.subr.mxu0 0.0
    %v85 = vand.u32 %v51, 4294901760
    %86 = vmatpush1.msra.mxu0 %v85
    %87 = vmatprep.subr.mxu0 0.0
    %88 = vmatpush1.msra.mxu0 0.0
    %89 = vmatprep.subr.mxu0 0.0
    %90 = vmatpush1.msra.mxu0 0.0
    %91 = vmatprep.subr.mxu0 0.0
    %92 = vmatpush1.msra.mxu0 0.0
    %93 = vmatprep.subr.mxu0 0.0
    %94 = vmatpush1.msra.mxu0 0.0
    %95 = vmatprep.subr.mxu0 0.0
    %96 = vmatpush1.msra.mxu0 0.0
    %97 = vmatprep.subr.mxu0 0.0
    %98 = vmatpush1.msra.mxu0 0.0
    %99 = vmatprep.subr.mxu0 0.0
    %100 = vmatpush1.msra.mxu0 0.0
    %101 = vmatprep.subr.mxu0 0.0
    %102 = vmatpush1.msra.mxu0 0.0
    %103 = vmatprep.subr.mxu0 0.0
    %104 = vmatpush1.msra.mxu0 0.0
    %105 = vmatprep.subr.mxu0 0.0
    %106 = vmatpush1.msra.mxu0 0.0
    %107 = vmatprep.subr.mxu0 0.0
    %108 = vmatpush1.msra.mxu0 0.0
    %109 = vmatprep.subr.mxu0 0.0
    %110 = vmatpush1.msra.mxu0 0.0
    %111 = vmatprep.subr.mxu0 0.0
    %112 = vmatpush1.msra.mxu0 0.0
    %113 = vmatprep.subr.mxu0 0.0
    %114 = vmatpush1.msra.mxu0 0.0
    %115 = vmatprep.subr.mxu0 0.0
    %116 = vmatpush1.msra.mxu0 0.0
    %117 = vmatprep.subr.mxu0 0.0
    %118 = vmatpush1.msra.mxu0 0.0
    %119 = vmatprep.subr.mxu0 0.0
    %120 = vmatpush1.msra.mxu0 0.0
    %121 = vmatprep.subr.mxu0 0.0
    %122 = vmatpush1.msra.mxu0 0.0
    %123 = vmatprep.subr.mxu0 0.0
    %124 = vmatpush1.msra.mxu0 0.0
    %125 = vmatprep.subr.mxu0 0.0
    %126 = vmatpush1.msra.mxu0 0.0
    %127 = vmatprep.subr.mxu0 0.0
    %128 = vmatpush1.msra.mxu0 0.0
    %129 = vmatprep.subr.mxu0 0.0
    %130 = vmatpush1.msra.mxu0 0.0
    %131 = vmatprep.subr.mxu0 0.0
    %132 = vmatpush1.msra.mxu0 0.0
    %133 = vmatprep.subr.mxu0 0.0
    %134 = vmatpush1.msra.mxu0 0.0
    %135 = vmatprep.mubr.f32.mxu0 0.0
    %v136 = vand.u32 %v61, 4294901760
    %v137 = vsub.f32 %v61, %v136
    %v138 = vand.u32 %v137, 4294901760
    %v139 = vsub.f32 %v137, %v138
    %v140 = vand.u32 %v139, 4294901760
    %141 = vmatmul.mubr.f32.gmra.mrb[0].mxu0 %v140
    %v142 = vpop.f32.mrb[0].mxu0
    %v143 = vadd.f32 %v57, %v142
    %v144 = vpop.f32.mrb[0].mxu0
    %145 = vdwg.mxu0
    %146 = vmatprep.subr.mxu0 0.0
    %v147 = vand.u32 %v44, 4294901760
    %v148 = vsub.f32 %v44, %v147
    %v149 = vand.u32 %v148, 4294901760
    %v150 = vsub.f32 %v148, %v149
    %v151 = vand.u32 %v150, 4294901760
    %152 = vmatpush1.msra.mxu0 %v151
    %153 = vmatprep.subr.mxu0 0.0
    %v154 = vand.u32 %v45, 4294901760
    %v155 = vsub.f32 %v45, %v154
    %v156 = vand.u32 %v155, 4294901760
    %v157 = vsub.f32 %v155, %v156
    %v158 = vand.u32 %v157, 4294901760
    %159 = vmatpush1.msra.mxu0 %v158
    %160 = vmatprep.subr.mxu0 0.0
    %v161 = vand.u32 %v46, 4294901760
    %v162 = vsub.f32 %v46, %v161
    %v163 = vand.u32 %v162, 4294901760
    %v164 = vsub.f32 %v162, %v163
    %v165 = vand.u32 %v164, 4294901760
    %166 = vmatpush1.msra.mxu0 %v165
    %167 = vmatprep.subr.mxu0 0.0
    %v168 = vand.u32 %v47, 4294901760
    %v169 = vsub.f32 %v47, %v168
    %v170 = vand.u32 %v169, 4294901760
    %v171 = vsub.f32 %v169, %v170
    %v172 = vand.u32 %v171, 4294901760
    %173 = vmatpush1.msra.mxu0 %v172
    %174 = vmatprep.subr.mxu0 0.0
    %v175 = vand.u32 %v48, 4294901760
    %v176 = vsub.f32 %v48, %v175
    %v177 = vand.u32 %v176, 4294901760
    %v178 = vsub.f32 %v176, %v177
    %v179 = vand.u32 %v178, 4294901760
    %180 = vmatpush1.msra.mxu0 %v179
    %181 = vmatprep.subr.mxu0 0.0
    %v182 = vand.u32 %v49, 4294901760
    %v183 = vsub.f32 %v49, %v182
    %v184 = vand.u32 %v183, 4294901760
    %v185 = vsub.f32 %v183, %v184
    %v186 = vand.u32 %v185, 4294901760
    %187 = vmatpush1.msra.mxu0 %v186
    %188 = vmatprep.subr.mxu0 0.0
    %v189 = vand.u32 %v50, 4294901760
    %v190 = vsub.f32 %v50, %v189
    %v191 = vand.u32 %v190, 4294901760
    %v192 = vsub.f32 %v190, %v191
    %v193 = vand.u32 %v192, 4294901760
    %194 = vmatpush1.msra.mxu0 %v193
    %195 = vmatprep.subr.mxu0 0.0
    %v196 = vand.u32 %v51, 4294901760
    %v197 = vsub.f32 %v51, %v196
    %v198 = vand.u32 %v197, 4294901760
    %v199 = vsub.f32 %v197, %v198
    %v200 = vand.u32 %v199, 4294901760
    %201 = vmatpush1.msra.mxu0 %v200
    %202 = vmatprep.subr.mxu0 0.0
    %203 = vmatpush1.msra.mxu0 0.0
    %204 = vmatprep.subr.mxu0 0.0
    %205 = vmatpush1.msra.mxu0 0.0
    %206 = vmatprep.subr.mxu0 0.0
    %207 = vmatpush1.msra.mxu0 0.0
    %208 = vmatprep.subr.mxu0 0.0
    %209 = vmatpush1.msra.mxu0 0.0
    %210 = vmatprep.subr.mxu0 0.0
    %211 = vmatpush1.msra.mxu0 0.0
    %212 = vmatprep.subr.mxu0 0.0
    %213 = vmatpush1.msra.mxu0 0.0
    %214 = vmatprep.subr.mxu0 0.0
    %215 = vmatpush1.msra.mxu0 0.0
    %216 = vmatprep.subr.mxu0 0.0
    %217 = vmatpush1.msra.mxu0 0.0
    %218 = vmatprep.subr.mxu0 0.0
    %219 = vmatpush1.msra.mxu0 0.0
    %220 = vmatprep.subr.mxu0 0.0
    %221 = vmatpush1.msra.mxu0 0.0
    %222 = vmatprep.subr.mxu0 0.0
    %223 = vmatpush1.msra.mxu0 0.0
    %224 = vmatprep.subr.mxu0 0.0
    %225 = vmatpush1.msra.mxu0 0.0
    %226 = vmatprep.subr.mxu0 0.0
    %227 = vmatpush1.msra.mxu0 0.0
    %228 = vmatprep.subr.mxu0 0.0
    %229 = vmatpush1.msra.mxu0 0.0
    %230 = vmatprep.subr.mxu0 0.0
    %231 = vmatpush1.msra.mxu0 0.0
    %232 = vmatprep.subr.mxu0 0.0
    %233 = vmatpush1.msra.mxu0 0.0
    %234 = vmatprep.subr.mxu0 0.0
    %235 = vmatpush1.msra.mxu0 0.0
    %236 = vmatprep.subr.mxu0 0.0
    %237 = vmatpush1.msra.mxu0 0.0
    %238 = vmatprep.subr.mxu0 0.0
    %239 = vmatpush1.msra.mxu0 0.0
    %240 = vmatprep.subr.mxu0 0.0
    %241 = vmatpush1.msra.mxu0 0.0
    %242 = vmatprep.subr.mxu0 0.0
    %243 = vmatpush1.msra.mxu0 0.0
    %244 = vmatprep.subr.mxu0 0.0
    %245 = vmatpush1.msra.mxu0 0.0
    %246 = vmatprep.subr.mxu0 0.0
    %247 = vmatpush1.msra.mxu0 0.0
    %248 = vmatprep.subr.mxu0 0.0
    %249 = vmatpush1.msra.mxu0 0.0
    %250 = vmatprep.mubr.f32.mxu0 0.0
    %v251 = vand.u32 %v61, 4294901760
    %252 = vmatmul.mubr.f32.gmra.mrb[0].mxu0 %v251
    %v253 = vpop.f32.mrb[0].mxu0
    %v254 = vadd.f32 %v143, %v253
    %v255 = vpop.f32.mrb[0].mxu0
    %256 = vdwg.mxu0
    %257 = vmatprep.subr.mxu0 0.0
    %v258 = vand.u32 %v44, 4294901760
    %v259 = vsub.f32 %v44, %v258
    %260 = vmatpush1.msra.mxu0 %v259
    %261 = vmatprep.subr.mxu0 0.0
    %v262 = vand.u32 %v45, 4294901760
    %v263 = vsub.f32 %v45, %v262
    %264 = vmatpush1.msra.mxu0 %v263
    %265 = vmatprep.subr.mxu0 0.0
    %v266 = vand.u32 %v46, 4294901760
    %v267 = vsub.f32 %v46, %v266
    %268 = vmatpush1.msra.mxu0 %v267
    %269 = vmatprep.subr.mxu0 0.0
    %v270 = vand.u32 %v47, 4294901760
    %v271 = vsub.f32 %v47, %v270
    %272 = vmatpush1.msra.mxu0 %v271
    %273 = vmatprep.subr.mxu0 0.0
    %v274 = vand.u32 %v48, 4294901760
    %v275 = vsub.f32 %v48, %v274
    %276 = vmatpush1.msra.mxu0 %v275
    %277 = vmatprep.subr.mxu0 0.0
    %v278 = vand.u32 %v49, 4294901760
    %v279 = vsub.f32 %v49, %v278
    %280 = vmatpush1.msra.mxu0 %v279
    %281 = vmatprep.subr.mxu0 0.0
    %v282 = vand.u32 %v50, 4294901760
    %v283 = vsub.f32 %v50, %v282
    %284 = vmatpush1.msra.mxu0 %v283
    %285 = vmatprep.subr.mxu0 0.0
    %v286 = vand.u32 %v51, 4294901760
    %v287 = vsub.f32 %v51, %v286
    %288 = vmatpush1.msra.mxu0 %v287
    %289 = vmatprep.subr.mxu0 0.0
    %290 = vmatpush1.msra.mxu0 0.0
    %291 = vmatprep.subr.mxu0 0.0
    %292 = vmatpush1.msra.mxu0 0.0
    %293 = vmatprep.subr.mxu0 0.0
    %294 = vmatpush1.msra.mxu0 0.0
    %295 = vmatprep.subr.mxu0 0.0
    %296 = vmatpush1.msra.mxu0 0.0
    %297 = vmatprep.subr.mxu0 0.0
    %298 = vmatpush1.msra.mxu0 0.0
    %299 = vmatprep.subr.mxu0 0.0
    %300 = vmatpush1.msra.mxu0 0.0
    %301 = vmatprep.subr.mxu0 0.0
    %302 = vmatpush1.msra.mxu0 0.0
    %303 = vmatprep.subr.mxu0 0.0
    %304 = vmatpush1.msra.mxu0 0.0
    %305 = vmatprep.subr.mxu0 0.0
    %306 = vmatpush1.msra.mxu0 0.0
    %307 = vmatprep.subr.mxu0 0.0
    %308 = vmatpush1.msra.mxu0 0.0
    %309 = vmatprep.subr.mxu0 0.0
    %310 = vmatpush1.msra.mxu0 0.0
    %311 = vmatprep.subr.mxu0 0.0
    %312 = vmatpush1.msra.mxu0 0.0
    %313 = vmatprep.subr.mxu0 0.0
    %314 = vmatpush1.msra.mxu0 0.0
    %315 = vmatprep.subr.mxu0 0.0
    %316 = vmatpush1.msra.mxu0 0.0
    %317 = vmatprep.subr.mxu0 0.0
    %318 = vmatpush1.msra.mxu0 0.0
    %319 = vmatprep.subr.mxu0 0.0
    %320 = vmatpush1.msra.mxu0 0.0
    %321 = vmatprep.subr.mxu0 0.0
    %322 = vmatpush1.msra.mxu0 0.0
    %323 = vmatprep.subr.mxu0 0.0
    %324 = vmatpush1.msra.mxu0 0.0
    %325 = vmatprep.subr.mxu0 0.0
    %326 = vmatpush1.msra.mxu0 0.0
    %327 = vmatprep.subr.mxu0 0.0
    %328 = vmatpush1.msra.mxu0 0.0
    %329 = vmatprep.subr.mxu0 0.0
    %330 = vmatpush1.msra.mxu0 0.0
    %331 = vmatprep.subr.mxu0 0.0
    %332 = vmatpush1.msra.mxu0 0.0
    %333 = vmatprep.subr.mxu0 0.0
    %334 = vmatpush1.msra.mxu0 0.0
    %335 = vmatprep.subr.mxu0 0.0
    %336 = vmatpush1.msra.mxu0 0.0
    %337 = vmatprep.mubr.f32.mxu0 0.0
    %v338 = vand.u32 %v61, 4294901760
    %v339 = vsub.f32 %v61, %v338
    %340 = vmatmul.mubr.f32.gmra.mrb[0].mxu0 %v339
    %v341 = vpop.f32.mrb[0].mxu0
    %v342 = vadd.f32 %v254, %v341
    %v343 = vpop.f32.mrb[0].mxu0
    %344 = vdwg.mxu0
    %345 = vmatprep.subr.mxu0 0.0
    %v346 = vand.u32 %v44, 4294901760
    %347 = vmatpush1.msra.mxu0 %v346
    %348 = vmatprep.subr.mxu0 0.0
    %v349 = vand.u32 %v45, 4294901760
    %350 = vmatpush1.msra.mxu0 %v349
    %351 = vmatprep.subr.mxu0 0.0
    %v352 = vand.u32 %v46, 4294901760
    %353 = vmatpush1.msra.mxu0 %v352
    %354 = vmatprep.subr.mxu0 0.0
    %v355 = vand.u32 %v47, 4294901760
    %356 = vmatpush1.msra.mxu0 %v355
    %357 = vmatprep.subr.mxu0 0.0
    %v358 = vand.u32 %v48, 4294901760
    %359 = vmatpush1.msra.mxu0 %v358
    %360 = vmatprep.subr.mxu0 0.0
    %v361 = vand.u32 %v49, 4294901760
    %362 = vmatpush1.msra.mxu0 %v361
    %363 = vmatprep.subr.mxu0 0.0
    %v364 = vand.u32 %v50, 4294901760
    %365 = vmatpush1.msra.mxu0 %v364
    %366 = vmatprep.subr.mxu0 0.0
    %v367 = vand.u32 %v51, 4294901760
    %368 = vmatpush1.msra.mxu0 %v367
    %369 = vmatprep.subr.mxu0 0.0
    %370 = vmatpush1.msra.mxu0 0.0
    %371 = vmatprep.subr.mxu0 0.0
    %372 = vmatpush1.msra.mxu0 0.0
    %373 = vmatprep.subr.mxu0 0.0
    %374 = vmatpush1.msra.mxu0 0.0
    %375 = vmatprep.subr.mxu0 0.0
    %376 = vmatpush1.msra.mxu0 0.0
    %377 = vmatprep.subr.mxu0 0.0
    %378 = vmatpush1.msra.mxu0 0.0
    %379 = vmatprep.subr.mxu0 0.0
    %380 = vmatpush1.msra.mxu0 0.0
    %381 = vmatprep.subr.mxu0 0.0
    %382 = vmatpush1.msra.mxu0 0.0
    %383 = vmatprep.subr.mxu0 0.0
    %384 = vmatpush1.msra.mxu0 0.0
    %385 = vmatprep.subr.mxu0 0.0
    %386 = vmatpush1.msra.mxu0 0.0
    %387 = vmatprep.subr.mxu0 0.0
    %388 = vmatpush1.msra.mxu0 0.0
    %389 = vmatprep.subr.mxu0 0.0
    %390 = vmatpush1.msra.mxu0 0.0
    %391 = vmatprep.subr.mxu0 0.0
    %392 = vmatpush1.msra.mxu0 0.0
    %393 = vmatprep.subr.mxu0 0.0
    %394 = vmatpush1.msra.mxu0 0.0
    %395 = vmatprep.subr.mxu0 0.0
    %396 = vmatpush1.msra.mxu0 0.0
    %397 = vmatprep.subr.mxu0 0.0
    %398 = vmatpush1.msra.mxu0 0.0
    %399 = vmatprep.subr.mxu0 0.0
    %400 = vmatpush1.msra.mxu0 0.0
    %401 = vmatprep.subr.mxu0 0.0
    %402 = vmatpush1.msra.mxu0 0.0
    %403 = vmatprep.subr.mxu0 0.0
    %404 = vmatpush1.msra.mxu0 0.0
    %405 = vmatprep.subr.mxu0 0.0
    %406 = vmatpush1.msra.mxu0 0.0
    %407 = vmatprep.subr.mxu0 0.0
    %408 = vmatpush1.msra.mxu0 0.0
    %409 = vmatprep.subr.mxu0 0.0
    %410 = vmatpush1.msra.mxu0 0.0
    %411 = vmatprep.subr.mxu0 0.0
    %412 = vmatpush1.msra.mxu0 0.0
    %413 = vmatprep.subr.mxu0 0.0
    %414 = vmatpush1.msra.mxu0 0.0
    %415 = vmatprep.subr.mxu0 0.0
    %416 = vmatpush1.msra.mxu0 0.0
    %417 = vmatprep.mubr.f32.mxu0 0.0
    %v418 = vand.u32 %v61, 4294901760
    %v419 = vsub.f32 %v61, %v418
    %v420 = vand.u32 %v419, 4294901760
    %421 = vmatmul.mubr.f32.gmra.mrb[0].mxu0 %v420
    %v422 = vpop.f32.mrb[0].mxu0
    %v423 = vadd.f32 %v342, %v422
    %v424 = vpop.f32.mrb[0].mxu0
    %425 = vdwg.mxu0
    %426 = vmatprep.subr.mxu0 0.0
    %v427 = vand.u32 %v44, 4294901760
    %v428 = vsub.f32 %v44, %v427
    %v429 = vand.u32 %v428, 4294901760
    %430 = vmatpush1.msra.mxu0 %v429
    %431 = vmatprep.subr.mxu0 0.0
    %v432 = vand.u32 %v45, 4294901760
    %v433 = vsub.f32 %v45, %v432
    %v434 = vand.u32 %v433, 4294901760
    %435 = vmatpush1.msra.mxu0 %v434
    %436 = vmatprep.subr.mxu0 0.0
    %v437 = vand.u32 %v46, 4294901760
    %v438 = vsub.f32 %v46, %v437
    %v439 = vand.u32 %v438, 4294901760
    %440 = vmatpush1.msra.mxu0 %v439
    %441 = vmatprep.subr.mxu0 0.0
    %v442 = vand.u32 %v47, 4294901760
    %v443 = vsub.f32 %v47, %v442
    %v444 = vand.u32 %v443, 4294901760
    %445 = vmatpush1.msra.mxu0 %v444
    %446 = vmatprep.subr.mxu0 0.0
    %v447 = vand.u32 %v48, 4294901760
    %v448 = vsub.f32 %v48, %v447
    %v449 = vand.u32 %v448, 4294901760
    %450 = vmatpush1.msra.mxu0 %v449
    %451 = vmatprep.subr.mxu0 0.0
    %v452 = vand.u32 %v49, 4294901760
    %v453 = vsub.f32 %v49, %v452
    %v454 = vand.u32 %v453, 4294901760
    %455 = vmatpush1.msra.mxu0 %v454
    %456 = vmatprep.subr.mxu0 0.0
    %v457 = vand.u32 %v50, 4294901760
    %v458 = vsub.f32 %v50, %v457
    %v459 = vand.u32 %v458, 4294901760
    %460 = vmatpush1.msra.mxu0 %v459
    %461 = vmatprep.subr.mxu0 0.0
    %v462 = vand.u32 %v51, 4294901760
    %v463 = vsub.f32 %v51, %v462
    %v464 = vand.u32 %v463, 4294901760
    %465 = vmatpush1.msra.mxu0 %v464
    %466 = vmatprep.subr.mxu0 0.0
    %467 = vmatpush1.msra.mxu0 0.0
    %468 = vmatprep.subr.mxu0 0.0
    %469 = vmatpush1.msra.mxu0 0.0
    %470 = vmatprep.subr.mxu0 0.0
    %471 = vmatpush1.msra.mxu0 0.0
    %472 = vmatprep.subr.mxu0 0.0
    %473 = vmatpush1.msra.mxu0 0.0
    %474 = vmatprep.subr.mxu0 0.0
    %475 = vmatpush1.msra.mxu0 0.0
    %476 = vmatprep.subr.mxu0 0.0
    %477 = vmatpush1.msra.mxu0 0.0
    %478 = vmatprep.subr.mxu0 0.0
    %479 = vmatpush1.msra.mxu0 0.0
    %480 = vmatprep.subr.mxu0 0.0
    %481 = vmatpush1.msra.mxu0 0.0
    %482 = vmatprep.subr.mxu0 0.0
    %483 = vmatpush1.msra.mxu0 0.0
    %484 = vmatprep.subr.mxu0 0.0
    %485 = vmatpush1.msra.mxu0 0.0
    %486 = vmatprep.subr.mxu0 0.0
    %487 = vmatpush1.msra.mxu0 0.0
    %488 = vmatprep.subr.mxu0 0.0
    %489 = vmatpush1.msra.mxu0 0.0
    %490 = vmatprep.subr.mxu0 0.0
    %491 = vmatpush1.msra.mxu0 0.0
    %492 = vmatprep.subr.mxu0 0.0
    %493 = vmatpush1.msra.mxu0 0.0
    %494 = vmatprep.subr.mxu0 0.0
    %495 = vmatpush1.msra.mxu0 0.0
    %496 = vmatprep.subr.mxu0 0.0
    %497 = vmatpush1.msra.mxu0 0.0
    %498 = vmatprep.subr.mxu0 0.0
    %499 = vmatpush1.msra.mxu0 0.0
    %500 = vmatprep.subr.mxu0 0.0
    %501 = vmatpush1.msra.mxu0 0.0
    %502 = vmatprep.subr.mxu0 0.0
    %503 = vmatpush1.msra.mxu0 0.0
    %504 = vmatprep.subr.mxu0 0.0
    %505 = vmatpush1.msra.mxu0 0.0
    %506 = vmatprep.subr.mxu0 0.0
    %507 = vmatpush1.msra.mxu0 0.0
    %508 = vmatprep.subr.mxu0 0.0
    %509 = vmatpush1.msra.mxu0 0.0
    %510 = vmatprep.subr.mxu0 0.0
    %511 = vmatpush1.msra.mxu0 0.0
    %512 = vmatprep.subr.mxu0 0.0
    %513 = vmatpush1.msra.mxu0 0.0
    %514 = vmatprep.mubr.f32.mxu0 0.0
    %v515 = vand.u32 %v61, 4294901760
    %516 = vmatmul.mubr.f32.gmra.mrb[0].mxu0 %v515
    %v517 = vpop.f32.mrb[0].mxu0
    %v518 = vadd.f32 %v423, %v517
    %v519 = vpop.f32.mrb[0].mxu0
    %520 = vdwg.mxu0
    %521 = vmatprep.subr.mxu0 0.0
    %v522 = vand.u32 %v44, 4294901760
    %523 = vmatpush1.msra.mxu0 %v522
    %524 = vmatprep.subr.mxu0 0.0
    %v525 = vand.u32 %v45, 4294901760
    %526 = vmatpush1.msra.mxu0 %v525
    %527 = vmatprep.subr.mxu0 0.0
    %v528 = vand.u32 %v46, 4294901760
    %529 = vmatpush1.msra.mxu0 %v528
    %530 = vmatprep.subr.mxu0 0.0
    %v531 = vand.u32 %v47, 4294901760
    %532 = vmatpush1.msra.mxu0 %v531
    %533 = vmatprep.subr.mxu0 0.0
    %v534 = vand.u32 %v48, 4294901760
    %535 = vmatpush1.msra.mxu0 %v534
    %536 = vmatprep.subr.mxu0 0.0
    %v537 = vand.u32 %v49, 4294901760
    %538 = vmatpush1.msra.mxu0 %v537
    %539 = vmatprep.subr.mxu0 0.0
    %v540 = vand.u32 %v50, 4294901760
    %541 = vmatpush1.msra.mxu0 %v540
    %542 = vmatprep.subr.mxu0 0.0
    %v543 = vand.u32 %v51, 4294901760
    %544 = vmatpush1.msra.mxu0 %v543
    %545 = vmatprep.subr.mxu0 0.0
    %546 = vmatpush1.msra.mxu0 0.0
    %547 = vmatprep.subr.mxu0 0.0
    %548 = vmatpush1.msra.mxu0 0.0
    %549 = vmatprep.subr.mxu0 0.0
    %550 = vmatpush1.msra.mxu0 0.0
    %551 = vmatprep.subr.mxu0 0.0
    %552 = vmatpush1.msra.mxu0 0.0
    %553 = vmatprep.subr.mxu0 0.0
    %554 = vmatpush1.msra.mxu0 0.0
    %555 = vmatprep.subr.mxu0 0.0
    %556 = vmatpush1.msra.mxu0 0.0
    %557 = vmatprep.subr.mxu0 0.0
    %558 = vmatpush1.msra.mxu0 0.0
    %559 = vmatprep.subr.mxu0 0.0
    %560 = vmatpush1.msra.mxu0 0.0
    %561 = vmatprep.subr.mxu0 0.0
    %562 = vmatpush1.msra.mxu0 0.0
    %563 = vmatprep.subr.mxu0 0.0
    %564 = vmatpush1.msra.mxu0 0.0
    %565 = vmatprep.subr.mxu0 0.0
    %566 = vmatpush1.msra.mxu0 0.0
    %567 = vmatprep.subr.mxu0 0.0
    %568 = vmatpush1.msra.mxu0 0.0
    %569 = vmatprep.subr.mxu0 0.0
    %570 = vmatpush1.msra.mxu0 0.0
    %571 = vmatprep.subr.mxu0 0.0
    %572 = vmatpush1.msra.mxu0 0.0
    %573 = vmatprep.subr.mxu0 0.0
    %574 = vmatpush1.msra.mxu0 0.0
    %575 = vmatprep.subr.mxu0 0.0
    %576 = vmatpush1.msra.mxu0 0.0
    %577 = vmatprep.subr.mxu0 0.0
    %578 = vmatpush1.msra.mxu0 0.0
    %579 = vmatprep.subr.mxu0 0.0
    %580 = vmatpush1.msra.mxu0 0.0
    %581 = vmatprep.subr.mxu0 0.0
    %582 = vmatpush1.msra.mxu0 0.0
    %583 = vmatprep.subr.mxu0 0.0
    %584 = vmatpush1.msra.mxu0 0.0
    %585 = vmatprep.subr.mxu0 0.0
    %586 = vmatpush1.msra.mxu0 0.0
    %587 = vmatprep.subr.mxu0 0.0
    %588 = vmatpush1.msra.mxu0 0.0
    %589 = vmatprep.subr.mxu0 0.0
    %590 = vmatpush1.msra.mxu0 0.0
    %591 = vmatprep.subr.mxu0 0.0
    %592 = vmatpush1.msra.mxu0 0.0
    %593 = vmatprep.mubr.f32.mxu0 0.0
    %v594 = vand.u32 %v61, 4294901760
    %595 = vmatmul.mubr.f32.gmra.mrb[0].mxu0 %v594
    %v596 = vpop.f32.mrb[0].mxu0
    %v597 = vadd.f32 %v518, %v596
    %v598 = vpop.f32.mrb[0].mxu0
    %599 = vdwg.mxu0
    %v600 = vmax.f32 %v597, 0.0
    %601 = vst [vmem:[#allocation7] sm:$0xff] %v600
    // Predicated region
    $region22: #{tpu_custom_call.1} parent=1 // pred_check
      _
    $region23: #{tpu_custom_call.1} parent=1 // pred_check_branch
      %603 = sbr.rel (0) target = $region25
    $region24: #{tpu_custom_call.1} parent=1 // pred_region
      %s605 = ssub.s32 128, 16
      %606 = vsyncadd [#allocation4], %s605
      %s607 = sshll.u32 [#allocation7], 4
      %s608 = int_to_ptr.vmem [resolvable:$true] %s607
      %613 = dma.vmem_to_hbm [thread:$0]  %s608, 16, %s3, [#allocation4], 16, 16, 1
    $region25: #{tpu_custom_call.1} parent=1 // pred_fallthru
      _
    // Predicated region
    $region26: #{tpu_custom_call.1} parent=1 // pred_check
      _
    $region27: #{tpu_custom_call.1} parent=1 // pred_check_branch
      %615 = sbr.rel (0) target = $region29
    $region28: #{tpu_custom_call.1} parent=1 // pred_region
      %616 = dma.done [#allocation4], 128
    $region29: #{tpu_custom_call.1} parent=1 // pred_fallthru
      _
    %617 = vsyncpa [#allocation3], 1
    %618 = vsyncpa [#allocation6], 1
    %619 = vsyncpa [#allocation4], 1

</llo_original>
